<compile_context>
chip_gen: v7x
topology: tpu7x:2x2x1
jax: 0.10.0
libtpu: 0.0.40
codegen_flags: <defaults>
</compile_context>

<pallas_src>
import functools

import jax
import jax.numpy as jnp
import numpy as np
from jax import lax
from jax.experimental import pallas as pl
from jax.experimental.pallas import tpu as pltpu


# ---------------------------------------------------------------- kernel ----

def _dot(x, w):
    """bf16-operand matmul with f32 accumulation (w is pre-cast in the wrapper)."""
    return jnp.dot(x.astype(jnp.bfloat16), w, preferred_element_type=jnp.float32)


def _masked_softmax(e):
    """Row softmax of an additively masked score matrix (masked entries ~ -1e30)."""
    m = e.max(axis=-1, keepdims=True)
    p = jnp.exp(e - m)                      # masked entries underflow to exactly 0
    return p * pl.reciprocal(p.sum(axis=-1, keepdims=True), approx=True)


def _decomposable_attention_kernel(
    x_ref,       # (N, E)  bf16 : N = BB*(La+Lb); per batch elem, La A-rows then Lb B-rows
    amask_ref,   # (N, N)  f32  : 0 where attention allowed, -1e30 elsewhere
    w_in_ref,    # (3E, H) bf16 : [wf1; wg1a; wg1b]
    w_hid_ref,   # (5H, H) bf16 : [wf2; wg2; wh1a; wh1b; wh2]
    wo_ref,      # (H, OUT_PAD) bf16
    b_ref,       # (8, H)  f32  : rows = bf1, bf2, bg1, bg2, bh1, bh2, 0, 0
    bo_ref,      # (1, OUT_PAD) f32
    out_ref,     # (BB, OUT_PAD) f32
    *, BB, La, Lb,
):
    E = x_ref.shape[1]
    H = w_in_ref.shape[1]
    Lab = La + Lb

    X = x_ref[...]                                            # (N, E) bf16
    b = b_ref[...]                                            # (8, H) f32

    # Static, tile-aligned (multiples of E / H) slices of the packed weights.
    wf1  = w_in_ref[0:E, :]
    wg1a = w_in_ref[E:2 * E, :]
    wg1b = w_in_ref[2 * E:3 * E, :]
    wf2  = w_hid_ref[0:H, :]
    wg2  = w_hid_ref[H:2 * H, :]
    wh1a = w_hid_ref[2 * H:3 * H, :]
    wh1b = w_hid_ref[3 * H:4 * H, :]
    wh2  = w_hid_ref[4 * H:5 * H, :]
    bf1, bf2, bg1, bg2, bh1, bh2 = b[0:1], b[1:2], b[2:3], b[3:4], b[4:5], b[5:6]

    # ---- Attend.f over all A and B rows at once (shared weights) ----------
    h0 = jnp.maximum(_dot(X, wf1) + bf1, 0.0)
    fX = jnp.maximum(_dot(h0, wf2) + bf2, 0.0).astype(jnp.bfloat16)      # (N, H)

    # ---- One dense masked score matmul replaces 3*BB tiny batched dots ----
    # e[r, c] = <f(X)[r], f(X)[c]>; the additive mask keeps only (same batch,
    # A-row vs B-row) pairs, so a single row-softmax + matmul produces beta for
    # A rows and alpha for B rows in one shot.  Off-block probabilities are
    # exactly 0, so the attended-value matmul is unchanged semantically.
    # TODO(synk): for long sequences, block this (N, N) score matrix flash-style
    # (budget against v7x's 64 MiB VMEM / 32 MiB default scoped limit) instead of
    # materializing it whole.
    e = lax.dot_general(fX, fX, (((1,), (1,)), ((), ())),
                        preferred_element_type=jnp.float32)              # (N, N)
    p = _masked_softmax(e + amask_ref[...]).astype(jnp.bfloat16)
    att = jnp.dot(p, X, preferred_element_type=jnp.float32)              # (N, E)

    # ---- Compare.g: lane-axis concat [X, att] replaced by split-weight sum.
    # (On v6e/v7x a single K=2E matmul after a lane concat is a valid alternative;
    # the split avoids XLU shuffles and was measured clean previously.)
    h1 = jnp.maximum(_dot(X, wg1a) + _dot(att, wg1b) + bg1, 0.0)
    V = jnp.maximum(_dot(h1, wg2) + bg2, 0.0)                            # (N, H) f32

    # ---- Aggregate ---------------------------------------------------------
    # Lab is a multiple of 8 here, so this reshape is layout-preserving (no
    # cross-tile data movement); the sums are sublane reductions.
    V3 = V.reshape(BB, Lab, H)
    v_A = V3[:, :La, :].sum(axis=1)                                      # (BB, H)
    v_B = V3[:, La:, :].sum(axis=1)                                      # (BB, H)
    h2 = jnp.maximum(_dot(v_A, wh1a) + _dot(v_B, wh1b) + bh1, 0.0)
    h2 = jnp.maximum(_dot(h2, wh2) + bh2, 0.0)
    # Lane-dense (OUT_PAD=128) f32 store; only num_outputs lanes are meaningful.
    out_ref[...] = _dot(h2, wo_ref[...]) + bo_ref[...]                   # (BB, OUT_PAD)


# --------------------------------------------------------------- wrapper ----

def decomposable_attention(A, B, params):
    batch, La, E = A.shape
    Lb = B.shape[1]
    H = params["wf1"].shape[1]
    num_outputs = params["wo"].shape[1]
    bf16 = jnp.bfloat16
    Lab = La + Lb

    # ---- generation-aware batch block --------------------------------------
    kind = jax.devices()[0].device_kind.lower()
    # v4/v5 MXUs are 128-wide -> ~256 M-rows per step suffice; v6e/v7x are
    # 256-wide -> target ~512 rows per step.
    row_target = 256 if any(v in kind for v in ("v2", "v3", "v4", "v5")) else 512
    BB = max(1, min(batch, row_target // Lab))
    if batch >= 2:
        # Guarantee >= 2 grid steps so the "parallel" batch axis can shard across
        # both TensorCores on v7x (harmless on single-TC v5e/v6e).
        BB = min(BB, max(1, batch // 2))
    padded_batch = -(-batch // BB) * BB
    steps = padded_batch // BB
    N = BB * Lab

    # ---- inputs: one stacked row matrix per batch element ([A_b; B_b]) -----
    # All reshaping/stacking happens here in HBM (plain XLA), not in the kernel.
    X = jnp.concatenate([A, B], axis=1).astype(bf16)           # (batch, Lab, E)
    if padded_batch != batch:
        X = jnp.concatenate(
            [X, jnp.zeros((padded_batch - batch, Lab, E), bf16)], axis=0)
    X = X.reshape(steps, N, E)

    # ---- block-cross attention mask (0 allowed / -1e30 masked), built once ----
    pos = np.arange(N)
    same_elem = (pos[:, None] // Lab) == (pos[None, :] // Lab)
    is_a_row = (pos % Lab) < La
    cross = is_a_row[:, None] != is_a_row[None, :]
    amask = jnp.asarray(np.where(same_elem & cross, 0.0, -1e30), dtype=jnp.float32)

    # ---- packed constants (5 operands instead of 16) ------------------------
    out_pad = ((num_outputs + 127) // 128) * 128
    w_in = jnp.concatenate(
        [params["wf1"], params["wg1"][:E], params["wg1"][E:]], axis=0).astype(bf16)
    w_hid = jnp.concatenate(
        [params["wf2"], params["wg2"], params["wh1"][:H], params["wh1"][H:],
         params["wh2"]], axis=0).astype(bf16)
    wo_p = jnp.zeros((H, out_pad), jnp.float32).at[:, :num_outputs].set(
        params["wo"]).astype(bf16)
    biases = jnp.zeros((8, H), jnp.float32)
    for i, k in enumerate(("bf1", "bf2", "bg1", "bg2", "bh1", "bh2")):
        biases = biases.at[i].set(params[k][0])
    bo_p = jnp.zeros((1, out_pad), jnp.float32).at[:, :num_outputs].set(params["bo"])

    # Constant index_map => each weight/mask block is DMA'd exactly once.
    def const_spec(arr):
        return pl.BlockSpec(arr.shape, lambda b, _n=arr.ndim: (0,) * _n)

    kernel = functools.partial(_decomposable_attention_kernel, BB=BB, La=La, Lb=Lb)

    # Per-step VMEM footprint (X block, (N,N) mask/scores, packed weights) is a
    # few MB at these sizes -- well under the 32 MiB default scoped limit and
    # v7x's 64 MiB physical VMEM; re-budget if BB / sequence lengths scale up.
    out = pl.pallas_call(
        kernel,
        out_shape=jax.ShapeDtypeStruct((steps, BB, out_pad), jnp.float32),
        grid=(steps,),
        in_specs=[
            pl.BlockSpec((None, N, E), lambda b: (b, 0, 0)),
            const_spec(amask),
            const_spec(w_in),
            const_spec(w_hid),
            const_spec(wo_p),
            const_spec(biases),
            const_spec(bo_p),
        ],
        out_specs=pl.BlockSpec((None, BB, out_pad), lambda b: (b, 0, 0)),
        compiler_params=pltpu.CompilerParams(
            dimension_semantics=("parallel",)),
    )(X, amask, w_in, w_hid, wo_p, biases, bo_p)

    return out.reshape(padded_batch, out_pad)[:batch, :num_outputs]


# ------------------------------------------------------------- reference ----

def reference_forward(A, B, p, matmul_dtype=None):
    """Module-faithful forward. matmul_dtype=jnp.bfloat16 mirrors the kernel's
    mixed-precision policy (bf16 matmul operands, f32 accumulation)."""
    c = (lambda x: x) if matmul_dtype is None else (lambda x: x.astype(matmul_dtype))

    def dense(x, w, b):
        return jnp.dot(c(x), c(w), preferred_element_type=jnp.float32) + b

    def mlp2(x, w1, b1, w2, b2):
        h = jnp.maximum(dense(x, w1, b1), 0.0)
        return jnp.maximum(dense(h, w2, b2), 0.0)

    f_A = mlp2(A, p["wf1"], p["bf1"], p["wf2"], p["bf2"])
    f_B = mlp2(B, p["wf1"], p["bf1"], p["wf2"], p["bf2"])
    e = jnp.einsum("bik,bjk->bij", c(f_A), c(f_B), preferred_element_type=jnp.float32)
    beta = jnp.einsum("bij,bje->bie", c(jax.nn.softmax(e, axis=-1)), c(B),
                      preferred_element_type=jnp.float32)
    alpha = jnp.einsum("bij,bje->bie",
                       c(jax.nn.softmax(jnp.swapaxes(e, 1, 2), axis=-1)), c(A),
                       preferred_element_type=jnp.float32)
    V_A = mlp2(jnp.concatenate([A, beta], axis=2), p["wg1"], p["bg1"], p["wg2"], p["bg2"])
    V_B = mlp2(jnp.concatenate([B, alpha], axis=2), p["wg1"], p["bg1"], p["wg2"], p["bg2"])
    v_A = V_A.sum(axis=1)
    v_B = V_B.sum(axis=1)
    h = mlp2(jnp.concatenate([v_A, v_B], axis=1), p["wh1"], p["bh1"], p["wh2"], p["bh2"])
    return dense(h, p["wo"], p["bo"])


# ------------------------------------------------------------------ main ----

def init_params(key, embed, hidden, num_outputs):
    ks = jax.random.split(key, 8)
    s = 0.1
    return {
        # Attend.f : mlp(embed -> hidden -> hidden)
        "wf1": s * jax.random.normal(ks[0], (embed, hidden), jnp.float32),
        "bf1": jnp.zeros((1, hidden), jnp.float32),
        "wf2": s * jax.random.normal(ks[1], (hidden, hidden), jnp.float32),
        "bf2": jnp.zeros((1, hidden), jnp.float32),
        # Compare.g : mlp(2*embed -> hidden -> hidden)
        "wg1": s * jax.random.normal(ks[2], (2 * embed, hidden), jnp.float32),
        "bg1": jnp.zeros((1, hidden), jnp.float32),
        "wg2": s * jax.random.normal(ks[3], (hidden, hidden), jnp.float32),
        "bg2": jnp.zeros((1, hidden), jnp.float32),
        # Aggregate.h : mlp(2*hidden -> hidden -> hidden)
        "wh1": s * jax.random.normal(ks[4], (2 * hidden, hidden), jnp.float32),
        "bh1": jnp.zeros((1, hidden), jnp.float32),
        "wh2": s * jax.random.normal(ks[5], (hidden, hidden), jnp.float32),
        "bh2": jnp.zeros((1, hidden), jnp.float32),
        # Aggregate.linear : hidden -> num_outputs
        "wo": s * jax.random.normal(ks[6], (hidden, num_outputs), jnp.float32),
        "bo": jnp.zeros((1, num_outputs), jnp.float32),
    }


if __name__ == "__main__":
    key = jax.random.PRNGKey(0)
    k_emb, k_par, k_u, k_j = jax.random.split(key, 4)

    batch, seq, embed, hidden, num_outputs, vocab = 2, 8, 32, 32, 2, 50

    # TODO(synk): EntityLoader(root_data_dir) replaced by a deterministic
    # in-script embedding table (no file I/O available).
    emb_table = 0.5 * jax.random.normal(k_emb, (vocab, embed), jnp.float32)
    params = init_params(k_par, embed, hidden, num_outputs)

    user_ids = jax.random.randint(k_u, (batch, seq), 0, vocab)
    job_ids = jax.random.randint(k_j, (batch, seq), 0, vocab)

    # embedding lookup (glue, plain JAX)
    A = jnp.take(emb_table, user_ids, axis=0)   # (batch, seq, embed)
    B = jnp.take(emb_table, job_ids, axis=0)    # (batch, seq, embed)

    out = decomposable_attention(A, B, params)
    out = jax.block_until_ready(out)

    # Tight check against a reference mirroring the kernel's precision policy
    # (bf16 matmul operands, f32 accumulation); loose sanity check vs. full f32.
    ref_mixed = reference_forward(A, B, params, matmul_dtype=jnp.bfloat16)
    ref_f32 = reference_forward(A, B, params)
    np.testing.assert_allclose(np.asarray(out), np.asarray(ref_mixed),
                               rtol=2e-2, atol=2e-2)
    np.testing.assert_allclose(np.asarray(out), np.asarray(ref_f32),
                               rtol=1e-1, atol=1e-1)

    assert out.shape == (batch, num_outputs)
    print("KERNEL_OK")
</pallas_src>

<mosaic_0001>
module attributes {stable_mosaic.version = 11 : i64} {
  func.func @_decomposable_attention_kernel(%arg0: i32, %arg1: memref<1x16x32xbf16, #tpu.memory_space<vmem>>, %arg2: memref<16x16xf32, #tpu.memory_space<vmem>>, %arg3: memref<96x32xbf16, #tpu.memory_space<vmem>>, %arg4: memref<160x32xbf16, #tpu.memory_space<vmem>>, %arg5: memref<32x128xbf16, #tpu.memory_space<vmem>>, %arg6: memref<8x32xf32, #tpu.memory_space<vmem>>, %arg7: memref<1x128xf32, #tpu.memory_space<vmem>>, %arg8: memref<1x1x128xf32, #tpu.memory_space<vmem>>) attributes {dimension_semantics = [#tpu.dimension_semantics<parallel>], iteration_bounds = array<i64: 2>, scalar_prefetch = 0 : i64, scratch_operands = 0 : i64, tpu.core_type = #tpu.core_type<tc>, window_params = [{transform_indices = @transform_0, window_bounds = array<i64: 1, 16, 32>}, {pipeline_mode = #tpu.pipeline_mode<synchronous>, transform_indices = @transform_1, window_bounds = array<i64: 16, 16>}, {pipeline_mode = #tpu.pipeline_mode<synchronous>, transform_indices = @transform_2, window_bounds = array<i64: 96, 32>}, {pipeline_mode = #tpu.pipeline_mode<synchronous>, transform_indices = @transform_3, window_bounds = array<i64: 160, 32>}, {pipeline_mode = #tpu.pipeline_mode<synchronous>, transform_indices = @transform_4, window_bounds = array<i64: 32, 128>}, {pipeline_mode = #tpu.pipeline_mode<synchronous>, transform_indices = @transform_5, window_bounds = array<i64: 8, 32>}, {pipeline_mode = #tpu.pipeline_mode<synchronous>, transform_indices = @transform_6, window_bounds = array<i64: 1, 128>}, {transform_indices = @transform_7, window_bounds = array<i64: 1, 1, 128>}]} {
    %c0 = arith.constant 0 : index
    %c0_0 = arith.constant 0 : index
    %c0_1 = arith.constant 0 : index
    %0 = vector.load %arg1[%c0, %c0_0, %c0_1] : memref<1x16x32xbf16, #tpu.memory_space<vmem>>, vector<1x16x32xbf16>
    %1 = vector.shape_cast %0 : vector<1x16x32xbf16> to vector<16x32xbf16>
    %c0_2 = arith.constant 0 : index
    %c0_3 = arith.constant 0 : index
    %2 = vector.load %arg6[%c0_2, %c0_3] : memref<8x32xf32, #tpu.memory_space<vmem>>, vector<8x32xf32>
    %c0_4 = arith.constant 0 : index
    %c0_5 = arith.constant 0 : index
    %3 = vector.load %arg3[%c0_4, %c0_5] : memref<96x32xbf16, #tpu.memory_space<vmem>>, vector<32x32xbf16>
    %c32 = arith.constant 32 : index
    %c0_6 = arith.constant 0 : index
    %4 = vector.load %arg3[%c32, %c0_6] : memref<96x32xbf16, #tpu.memory_space<vmem>>, vector<32x32xbf16>
    %c64 = arith.constant 64 : index
    %c0_7 = arith.constant 0 : index
    %5 = vector.load %arg3[%c64, %c0_7] : memref<96x32xbf16, #tpu.memory_space<vmem>>, vector<32x32xbf16>
    %c0_8 = arith.constant 0 : index
    %c0_9 = arith.constant 0 : index
    %6 = vector.load %arg4[%c0_8, %c0_9] : memref<160x32xbf16, #tpu.memory_space<vmem>>, vector<32x32xbf16>
    %c32_10 = arith.constant 32 : index
    %c0_11 = arith.constant 0 : index
    %7 = vector.load %arg4[%c32_10, %c0_11] : memref<160x32xbf16, #tpu.memory_space<vmem>>, vector<32x32xbf16>
    %c64_12 = arith.constant 64 : index
    %c0_13 = arith.constant 0 : index
    %8 = vector.load %arg4[%c64_12, %c0_13] : memref<160x32xbf16, #tpu.memory_space<vmem>>, vector<32x32xbf16>
    %c96 = arith.constant 96 : index
    %c0_14 = arith.constant 0 : index
    %9 = vector.load %arg4[%c96, %c0_14] : memref<160x32xbf16, #tpu.memory_space<vmem>>, vector<32x32xbf16>
    %c128 = arith.constant 128 : index
    %c0_15 = arith.constant 0 : index
    %10 = vector.load %arg4[%c128, %c0_15] : memref<160x32xbf16, #tpu.memory_space<vmem>>, vector<32x32xbf16>
    %11 = vector.extract_strided_slice %2 {offsets = [0, 0], sizes = [1, 32], strides = [1, 1]} : vector<8x32xf32> to vector<1x32xf32>
    %12 = vector.extract_strided_slice %2 {offsets = [1, 0], sizes = [1, 32], strides = [1, 1]} : vector<8x32xf32> to vector<1x32xf32>
    %13 = vector.extract_strided_slice %2 {offsets = [2, 0], sizes = [1, 32], strides = [1, 1]} : vector<8x32xf32> to vector<1x32xf32>
    %14 = vector.extract_strided_slice %2 {offsets = [3, 0], sizes = [1, 32], strides = [1, 1]} : vector<8x32xf32> to vector<1x32xf32>
    %15 = vector.extract_strided_slice %2 {offsets = [4, 0], sizes = [1, 32], strides = [1, 1]} : vector<8x32xf32> to vector<1x32xf32>
    %16 = vector.extract_strided_slice %2 {offsets = [5, 0], sizes = [1, 32], strides = [1, 1]} : vector<8x32xf32> to vector<1x32xf32>
    %cst = arith.constant dense<0.000000e+00> : vector<16x32xf32>
    %17 = tpu.matmul %1, %3, %cst {dimension_numbers = #tpu.dot_dimension_numbers<[1], [0], [0], [1], [0, 0, 1, 1], [], []>} : vector<16x32xbf16>, vector<32x32xbf16>, vector<16x32xf32> -> vector<16x32xf32>
    %18 = vector.broadcast %11 : vector<1x32xf32> to vector<16x32xf32>
    %19 = arith.addf %17, %18 : vector<16x32xf32>
    %cst_16 = arith.constant 0.000000e+00 : f32
    %20 = vector.broadcast %cst_16 : f32 to vector<16x32xf32>
    %21 = arith.maximumf %19, %20 : vector<16x32xf32>
    %22 = arith.truncf %21 : vector<16x32xf32> to vector<16x32xbf16>
    %cst_17 = arith.constant dense<0.000000e+00> : vector<16x32xf32>
    %23 = tpu.matmul %22, %6, %cst_17 {dimension_numbers = #tpu.dot_dimension_numbers<[1], [0], [0], [1], [0, 0, 1, 1], [], []>} : vector<16x32xbf16>, vector<32x32xbf16>, vector<16x32xf32> -> vector<16x32xf32>
    %24 = vector.broadcast %12 : vector<1x32xf32> to vector<16x32xf32>
    %25 = arith.addf %23, %24 : vector<16x32xf32>
    %cst_18 = arith.constant 0.000000e+00 : f32
    %26 = vector.broadcast %cst_18 : f32 to vector<16x32xf32>
    %27 = arith.maximumf %25, %26 : vector<16x32xf32>
    %28 = arith.truncf %27 : vector<16x32xf32> to vector<16x32xbf16>
    %cst_19 = arith.constant dense<0.000000e+00> : vector<16x16xf32>
    %29 = tpu.matmul %28, %28, %cst_19 {dimension_numbers = #tpu.dot_dimension_numbers<[1], [1], [0], [0], [0, 0, 1, 0], [], []>} : vector<16x32xbf16>, vector<16x32xbf16>, vector<16x16xf32> -> vector<16x16xf32>
    %c0_20 = arith.constant 0 : index
    %c0_21 = arith.constant 0 : index
    %30 = vector.load %arg2[%c0_20, %c0_21] : memref<16x16xf32, #tpu.memory_space<vmem>>, vector<16x16xf32>
    %31 = arith.addf %29, %30 : vector<16x16xf32>
    %cst_22 = arith.constant dense<0xFF800000> : vector<16xf32>
    %32 = vector.multi_reduction <maximumf>, %31, %cst_22 [1] : vector<16x16xf32> to vector<16xf32>
    %33 = vector.shape_cast %32 : vector<16xf32> to vector<16x1xf32>
    %34 = vector.broadcast %33 : vector<16x1xf32> to vector<16x16xf32>
    %35 = arith.subf %31, %34 : vector<16x16xf32>
    %36 = math.exp %35 : vector<16x16xf32>
    %cst_23 = arith.constant dense<0.000000e+00> : vector<16xf32>
    %37 = vector.multi_reduction <add>, %36, %cst_23 [1] : vector<16x16xf32> to vector<16xf32>
    %38 = vector.shape_cast %37 : vector<16xf32> to vector<16x1xf32>
    %39 = tpu.reciprocal %38 {approx = true} : vector<16x1xf32> -> vector<16x1xf32>
    %40 = vector.broadcast %39 : vector<16x1xf32> to vector<16x16xf32>
    %41 = arith.mulf %36, %40 : vector<16x16xf32>
    %42 = arith.truncf %41 : vector<16x16xf32> to vector<16x16xbf16>
    %cst_24 = arith.constant dense<0.000000e+00> : vector<16x32xf32>
    %43 = tpu.matmul %42, %1, %cst_24 {dimension_numbers = #tpu.dot_dimension_numbers<[1], [0], [0], [1], [0, 0, 1, 1], [], []>} : vector<16x16xbf16>, vector<16x32xbf16>, vector<16x32xf32> -> vector<16x32xf32>
    %cst_25 = arith.constant dense<0.000000e+00> : vector<16x32xf32>
    %44 = tpu.matmul %1, %4, %cst_25 {dimension_numbers = #tpu.dot_dimension_numbers<[1], [0], [0], [1], [0, 0, 1, 1], [], []>} : vector<16x32xbf16>, vector<32x32xbf16>, vector<16x32xf32> -> vector<16x32xf32>
    %45 = arith.truncf %43 : vector<16x32xf32> to vector<16x32xbf16>
    %cst_26 = arith.constant dense<0.000000e+00> : vector<16x32xf32>
    %46 = tpu.matmul %45, %5, %cst_26 {dimension_numbers = #tpu.dot_dimension_numbers<[1], [0], [0], [1], [0, 0, 1, 1], [], []>} : vector<16x32xbf16>, vector<32x32xbf16>, vector<16x32xf32> -> vector<16x32xf32>
    %47 = arith.addf %44, %46 : vector<16x32xf32>
    %48 = vector.broadcast %13 : vector<1x32xf32> to vector<16x32xf32>
    %49 = arith.addf %47, %48 : vector<16x32xf32>
    %cst_27 = arith.constant 0.000000e+00 : f32
    %50 = vector.broadcast %cst_27 : f32 to vector<16x32xf32>
    %51 = arith.maximumf %49, %50 : vector<16x32xf32>
    %52 = arith.truncf %51 : vector<16x32xf32> to vector<16x32xbf16>
    %cst_28 = arith.constant dense<0.000000e+00> : vector<16x32xf32>
    %53 = tpu.matmul %52, %7, %cst_28 {dimension_numbers = #tpu.dot_dimension_numbers<[1], [0], [0], [1], [0, 0, 1, 1], [], []>} : vector<16x32xbf16>, vector<32x32xbf16>, vector<16x32xf32> -> vector<16x32xf32>
    %54 = vector.broadcast %14 : vector<1x32xf32> to vector<16x32xf32>
    %55 = arith.addf %53, %54 : vector<16x32xf32>
    %cst_29 = arith.constant 0.000000e+00 : f32
    %56 = vector.broadcast %cst_29 : f32 to vector<16x32xf32>
    %57 = arith.maximumf %55, %56 : vector<16x32xf32>
    %58 = vector.shape_cast %57 : vector<16x32xf32> to vector<1x16x32xf32>
    %59 = vector.extract_strided_slice %58 {offsets = [0, 0, 0], sizes = [1, 8, 32], strides = [1, 1, 1]} : vector<1x16x32xf32> to vector<1x8x32xf32>
    %cst_30 = arith.constant dense<0.000000e+00> : vector<1x32xf32>
    %60 = vector.multi_reduction <add>, %59, %cst_30 [1] : vector<1x8x32xf32> to vector<1x32xf32>
    %61 = vector.extract_strided_slice %58 {offsets = [0, 8, 0], sizes = [1, 8, 32], strides = [1, 1, 1]} : vector<1x16x32xf32> to vector<1x8x32xf32>
    %cst_31 = arith.constant dense<0.000000e+00> : vector<1x32xf32>
    %62 = vector.multi_reduction <add>, %61, %cst_31 [1] : vector<1x8x32xf32> to vector<1x32xf32>
    %63 = arith.truncf %60 : vector<1x32xf32> to vector<1x32xbf16>
    %cst_32 = arith.constant dense<0.000000e+00> : vector<1x32xf32>
    %64 = tpu.matmul %63, %8, %cst_32 {dimension_numbers = #tpu.dot_dimension_numbers<[1], [0], [0], [1], [0, 0, 1, 1], [], []>} : vector<1x32xbf16>, vector<32x32xbf16>, vector<1x32xf32> -> vector<1x32xf32>
    %65 = arith.truncf %62 : vector<1x32xf32> to vector<1x32xbf16>
    %cst_33 = arith.constant dense<0.000000e+00> : vector<1x32xf32>
    %66 = tpu.matmul %65, %9, %cst_33 {dimension_numbers = #tpu.dot_dimension_numbers<[1], [0], [0], [1], [0, 0, 1, 1], [], []>} : vector<1x32xbf16>, vector<32x32xbf16>, vector<1x32xf32> -> vector<1x32xf32>
    %67 = arith.addf %64, %66 : vector<1x32xf32>
    %68 = arith.addf %67, %15 : vector<1x32xf32>
    %cst_34 = arith.constant 0.000000e+00 : f32
    %69 = vector.broadcast %cst_34 : f32 to vector<1x32xf32>
    %70 = arith.maximumf %68, %69 : vector<1x32xf32>
    %71 = arith.truncf %70 : vector<1x32xf32> to vector<1x32xbf16>
    %cst_35 = arith.constant dense<0.000000e+00> : vector<1x32xf32>
    %72 = tpu.matmul %71, %10, %cst_35 {dimension_numbers = #tpu.dot_dimension_numbers<[1], [0], [0], [1], [0, 0, 1, 1], [], []>} : vector<1x32xbf16>, vector<32x32xbf16>, vector<1x32xf32> -> vector<1x32xf32>
    %73 = arith.addf %72, %16 : vector<1x32xf32>
    %cst_36 = arith.constant 0.000000e+00 : f32
    %74 = vector.broadcast %cst_36 : f32 to vector<1x32xf32>
    %75 = arith.maximumf %73, %74 : vector<1x32xf32>
    %c0_37 = arith.constant 0 : index
    %c0_38 = arith.constant 0 : index
    %76 = vector.load %arg5[%c0_37, %c0_38] : memref<32x128xbf16, #tpu.memory_space<vmem>>, vector<32x128xbf16>
    %77 = arith.truncf %75 : vector<1x32xf32> to vector<1x32xbf16>
    %cst_39 = arith.constant dense<0.000000e+00> : vector<1x128xf32>
    %78 = tpu.matmul %77, %76, %cst_39 {dimension_numbers = #tpu.dot_dimension_numbers<[1], [0], [0], [1], [0, 0, 1, 1], [], []>} : vector<1x32xbf16>, vector<32x128xbf16>, vector<1x128xf32> -> vector<1x128xf32>
    %c0_40 = arith.constant 0 : index
    %c0_41 = arith.constant 0 : index
    %79 = vector.load %arg7[%c0_40, %c0_41] : memref<1x128xf32, #tpu.memory_space<vmem>>, vector<1x128xf32>
    %80 = arith.addf %78, %79 : vector<1x128xf32>
    %c0_42 = arith.constant 0 : index
    %c0_43 = arith.constant 0 : index
    %c0_44 = arith.constant 0 : index
    %81 = vector.load %arg8[%c0_42, %c0_43, %c0_44] : memref<1x1x128xf32, #tpu.memory_space<vmem>>, vector<1x1x128xf32>
    %82 = vector.shape_cast %81 : vector<1x1x128xf32> to vector<1x128xf32>
    %83 = vector.shape_cast %80 : vector<1x128xf32> to vector<1x1x128xf32>
    tpu.vector_store %arg8[%c0_42, %c0_43, %c0_44], %83 {strides = array<i32>} : memref<1x1x128xf32, #tpu.memory_space<vmem>>, vector<1x1x128xf32>,
    return
  }
  func.func @transform_0(%arg0: i32) -> (i32, i32, i32) {
    %c0_i32 = arith.constant 0 : i32
    %c0_i32_0 = arith.constant 0 : i32
    %c0_i32_1 = arith.constant 0 : i32
    return %arg0, %c0_i32, %c0_i32_0 : i32, i32, i32
  }
  func.func @transform_1(%arg0: i32) -> (i32, i32) {
    %c0_i32 = arith.constant 0 : i32
    %c0_i32_0 = arith.constant 0 : i32
    %c0_i32_1 = arith.constant 0 : i32
    return %c0_i32, %c0_i32_0 : i32, i32
  }
  func.func @transform_2(%arg0: i32) -> (i32, i32) {
    %c0_i32 = arith.constant 0 : i32
    %c0_i32_0 = arith.constant 0 : i32
    %c0_i32_1 = arith.constant 0 : i32
    return %c0_i32, %c0_i32_0 : i32, i32
  }
  func.func @transform_3(%arg0: i32) -> (i32, i32) {
    %c0_i32 = arith.constant 0 : i32
    %c0_i32_0 = arith.constant 0 : i32
    %c0_i32_1 = arith.constant 0 : i32
    return %c0_i32, %c0_i32_0 : i32, i32
  }
  func.func @transform_4(%arg0: i32) -> (i32, i32) {
    %c0_i32 = arith.constant 0 : i32
    %c0_i32_0 = arith.constant 0 : i32
    %c0_i32_1 = arith.constant 0 : i32
    return %c0_i32, %c0_i32_0 : i32, i32
  }
  func.func @transform_5(%arg0: i32) -> (i32, i32) {
    %c0_i32 = arith.constant 0 : i32
    %c0_i32_0 = arith.constant 0 : i32
    %c0_i32_1 = arith.constant 0 : i32
    return %c0_i32, %c0_i32_0 : i32, i32
  }
  func.func @transform_6(%arg0: i32) -> (i32, i32) {
    %c0_i32 = arith.constant 0 : i32
    %c0_i32_0 = arith.constant 0 : i32
    %c0_i32_1 = arith.constant 0 : i32
    return %c0_i32, %c0_i32_0 : i32, i32
  }
  func.func @transform_7(%arg0: i32) -> (i32, i32, i32) {
    %c0_i32 = arith.constant 0 : i32
    %c0_i32_0 = arith.constant 0 : i32
    %c0_i32_1 = arith.constant 0 : i32
    return %arg0, %c0_i32, %c0_i32_0 : i32, i32, i32
  }
}

</mosaic_0001>

<llo_original>
// kernel: tpu_custom_call.1
$region0: #{tpu_custom_call.1}
  #allocation0 [shape = 'u32[]', space=smem, size = 0x4, offset = 0x4, fixed_abs, tag = 'smem constant byte address 0x4 - core index']
  #allocation1 [shape = 'u32[144,128]{1,0:T(1,128)}', space=vmem, size = 0x12000, scoped, tag = 'internal scratch']
  %s0 = inlined_call_operand.vmem [shape: bf16[2,16,32], index: 0, kind: input, shape index: {}]
  %s1 = inlined_call_operand.vmem [shape: f32[16,16], index: 1, kind: input, shape index: {}]
  %s2 = inlined_call_operand.vmem [shape: bf16[96,32], index: 2, kind: input, shape index: {}]
  %s3 = inlined_call_operand.vmem [shape: bf16[160,32], index: 3, kind: input, shape index: {}]
  %s4 = inlined_call_operand.vmem [shape: bf16[32,128], index: 4, kind: input, shape index: {}]
  %s5 = inlined_call_operand.vmem [shape: f32[8,32], index: 5, kind: input, shape index: {}]
  %s6 = inlined_call_operand.vmem [shape: f32[1,128], index: 6, kind: input, shape index: {}]
  %s7 = inlined_call_operand.hbm [shape: f32[2,1,128], index: 7, kind: output, shape index: {}]
  %s8 = sld [smem:[#allocation0]]
  $region61: #{tpu_custom_call.1} parent=0
    _
  %s10 = ssub.s32 1, %s8
  %s11 = scalar_select 0, %s10, %s8
  $region1: #{tpu_custom_call.1} parent=0
    #allocation2 [shape = 'u8[1024]{0}', space=vmem, size = 0x400, scoped, tag = 'output window, operand 0']
    #allocation3 [shape = 's32[2]{0}', space=sflag, size = 0x8, scoped, tag = 'scoped memory for tpu_custom_call.1']
    %12 = vsyncpa [#allocation3], 0
    %s13 = scalar_lea.sflag [#allocation3], 1
    %14 = vsyncpa %s13, 0
    loop: start=0, step=1, limit=4
    $region2: #{tpu_custom_call.1} parent=1 // loop_pre_header
      _
    $region3: #{tpu_custom_call.1} parent=1 // loop_header
      %s16 = sphi 0, %s20
      %p17 = scmp.ge.s32.totalorder %s16, 4
      %s26 = sphi 0, %s28
      %s29 = sphi 0, %s26
      %s30 = sphi 0, %s29
      %s46 = sphi 0, %s30
      %s50 = sphi 0, %s50
      %s52 = sphi 0, %s50
      %s53 = sphi 0, %s52
      %s67 = sphi 0, %s53
      %s71 = sphi 0, %s71
      %s73 = sphi 0, %s71
      %s74 = sphi 0, %s73
      %s88 = sphi 0, %s74
      %s92 = sphi 0, %s92
      %s94 = sphi 0, %s92
      %s95 = sphi 0, %s94
      %s109 = sphi 0, %s95
      %s113 = sphi 0, %s113
      %s115 = sphi 0, %s113
      %s116 = sphi 0, %s115
      %s130 = sphi 0, %s116
      %s134 = sphi 0, %s134
      %s136 = sphi 0, %s134
      %s137 = sphi 0, %s136
      %s151 = sphi 0, %s137
      %s155 = sphi 0, %s155
      %s157 = sphi 0, %s155
      %s158 = sphi 0, %s157
      %s172 = sphi 0, %s158
      %s178 = sphi 0, %s180
      %s181 = sphi 0, %s178
      %s182 = sphi 0, %s181
      %s198 = sphi 0, %s182
    $region4: #{tpu_custom_call.1} parent=1 // loop_header_branch
      %19 = sbr.rel (%p17) target = $region8
    $region5: #{tpu_custom_call.1} parent=1 // loop_body
      %s21 = ssub.s32 %s16, 1
      %s22 = ssub.s32 %s16, 2
      %s23 = sadd.s32 %s16, 1
      %s24 = ssub.s32 %s16, %s23
      %p25 = scmp.eq.s32.totalorder %s24, 0
      %s27 = sadd.s32 %s26, 1
      %s28 = scalar_select %p25, %s26, %s27
      %p31 = pneg %p25
      %p32 = scmp.eq.s32.totalorder %s16, 1
      %p33 = por %p31, %p32
      %p34 = scmp.ne.s32.totalorder %s26, %s29
      %p35 = scmp.eq.s32.totalorder %s16, 0
      %p36 = por %p34, %p35
      %p37 = scmp.ne.s32.totalorder %s26, %s29
      %p38 = scmp.eq.s32.totalorder %s21, 1
      %p39 = por %p37, %p38
      %p40 = scmp.ne.s32.totalorder %s29, %s30
      %p41 = scmp.eq.s32.totalorder %s21, 0
      %p42 = por %p40, %p41
      %p43 = scmp.ne.s32.totalorder %s29, %s30
      %p44 = scmp.eq.s32.totalorder %s22, 1
      %p45 = por %p43, %p44
      %p47 = scmp.ne.s32.totalorder %s30, %s46
      %p48 = scmp.eq.s32.totalorder %s22, 0
      %p49 = por %p47, %p48
      %s51 = sadd.s32 %s50, 1
      %p54 = scmp.eq.s32.totalorder %s16, 1
      %p55 = scmp.ne.s32.totalorder %s50, %s52
      %p56 = scmp.eq.s32.totalorder %s16, 0
      %p57 = por %p55, %p56
      %p58 = scmp.ne.s32.totalorder %s50, %s52
      %p59 = scmp.eq.s32.totalorder %s21, 1
      %p60 = por %p58, %p59
      %p61 = scmp.ne.s32.totalorder %s52, %s53
      %p62 = scmp.eq.s32.totalorder %s21, 0
      %p63 = por %p61, %p62
      %p64 = scmp.ne.s32.totalorder %s52, %s53
      %p65 = scmp.eq.s32.totalorder %s22, 1
      %p66 = por %p64, %p65
      %p68 = scmp.ne.s32.totalorder %s53, %s67
      %p69 = scmp.eq.s32.totalorder %s22, 0
      %p70 = por %p68, %p69
      %s72 = sadd.s32 %s71, 1
      %p75 = scmp.eq.s32.totalorder %s16, 1
      %p76 = scmp.ne.s32.totalorder %s71, %s73
      %p77 = scmp.eq.s32.totalorder %s16, 0
      %p78 = por %p76, %p77
      %p79 = scmp.ne.s32.totalorder %s71, %s73
      %p80 = scmp.eq.s32.totalorder %s21, 1
      %p81 = por %p79, %p80
      %p82 = scmp.ne.s32.totalorder %s73, %s74
      %p83 = scmp.eq.s32.totalorder %s21, 0
      %p84 = por %p82, %p83
      %p85 = scmp.ne.s32.totalorder %s73, %s74
      %p86 = scmp.eq.s32.totalorder %s22, 1
      %p87 = por %p85, %p86
      %p89 = scmp.ne.s32.totalorder %s74, %s88
      %p90 = scmp.eq.s32.totalorder %s22, 0
      %p91 = por %p89, %p90
      %s93 = sadd.s32 %s92, 1
      %p96 = scmp.eq.s32.totalorder %s16, 1
      %p97 = scmp.ne.s32.totalorder %s92, %s94
      %p98 = scmp.eq.s32.totalorder %s16, 0
      %p99 = por %p97, %p98
      %p100 = scmp.ne.s32.totalorder %s92, %s94
      %p101 = scmp.eq.s32.totalorder %s21, 1
      %p102 = por %p100, %p101
      %p103 = scmp.ne.s32.totalorder %s94, %s95
      %p104 = scmp.eq.s32.totalorder %s21, 0
      %p105 = por %p103, %p104
      %p106 = scmp.ne.s32.totalorder %s94, %s95
      %p107 = scmp.eq.s32.totalorder %s22, 1
      %p108 = por %p106, %p107
      %p110 = scmp.ne.s32.totalorder %s95, %s109
      %p111 = scmp.eq.s32.totalorder %s22, 0
      %p112 = por %p110, %p111
      %s114 = sadd.s32 %s113, 1
      %p117 = scmp.eq.s32.totalorder %s16, 1
      %p118 = scmp.ne.s32.totalorder %s113, %s115
      %p119 = scmp.eq.s32.totalorder %s16, 0
      %p120 = por %p118, %p119
      %p121 = scmp.ne.s32.totalorder %s113, %s115
      %p122 = scmp.eq.s32.totalorder %s21, 1
      %p123 = por %p121, %p122
      %p124 = scmp.ne.s32.totalorder %s115, %s116
      %p125 = scmp.eq.s32.totalorder %s21, 0
      %p126 = por %p124, %p125
      %p127 = scmp.ne.s32.totalorder %s115, %s116
      %p128 = scmp.eq.s32.totalorder %s22, 1
      %p129 = por %p127, %p128
      %p131 = scmp.ne.s32.totalorder %s116, %s130
      %p132 = scmp.eq.s32.totalorder %s22, 0
      %p133 = por %p131, %p132
      %s135 = sadd.s32 %s134, 1
      %p138 = scmp.eq.s32.totalorder %s16, 1
      %p139 = scmp.ne.s32.totalorder %s134, %s136
      %p140 = scmp.eq.s32.totalorder %s16, 0
      %p141 = por %p139, %p140
      %p142 = scmp.ne.s32.totalorder %s134, %s136
      %p143 = scmp.eq.s32.totalorder %s21, 1
      %p144 = por %p142, %p143
      %p145 = scmp.ne.s32.totalorder %s136, %s137
      %p146 = scmp.eq.s32.totalorder %s21, 0
      %p147 = por %p145, %p146
      %p148 = scmp.ne.s32.totalorder %s136, %s137
      %p149 = scmp.eq.s32.totalorder %s22, 1
      %p150 = por %p148, %p149
      %p152 = scmp.ne.s32.totalorder %s137, %s151
      %p153 = scmp.eq.s32.totalorder %s22, 0
      %p154 = por %p152, %p153
      %s156 = sadd.s32 %s155, 1
      %p159 = scmp.eq.s32.totalorder %s16, 1
      %p160 = scmp.ne.s32.totalorder %s155, %s157
      %p161 = scmp.eq.s32.totalorder %s16, 0
      %p162 = por %p160, %p161
      %p163 = scmp.ne.s32.totalorder %s155, %s157
      %p164 = scmp.eq.s32.totalorder %s21, 1
      %p165 = por %p163, %p164
      %p166 = scmp.ne.s32.totalorder %s157, %s158
      %p167 = scmp.eq.s32.totalorder %s21, 0
      %p168 = por %p166, %p167
      %p169 = scmp.ne.s32.totalorder %s157, %s158
      %p170 = scmp.eq.s32.totalorder %s22, 1
      %p171 = por %p169, %p170
      %p173 = scmp.ne.s32.totalorder %s158, %s172
      %p174 = scmp.eq.s32.totalorder %s22, 0
      %p175 = por %p173, %p174
      %s176 = ssub.s32 %s16, %s23
      %p177 = scmp.eq.s32.totalorder %s176, 0
      %s179 = sadd.s32 %s178, 1
      %s180 = scalar_select %p177, %s178, %s179
      %p183 = pneg %p177
      %p184 = scmp.eq.s32.totalorder %s16, 1
      %p185 = por %p183, %p184
      %p186 = scmp.ne.s32.totalorder %s178, %s181
      %p187 = scmp.eq.s32.totalorder %s16, 0
      %p188 = por %p186, %p187
      %p189 = scmp.ne.s32.totalorder %s178, %s181
      %p190 = scmp.eq.s32.totalorder %s21, 1
      %p191 = por %p189, %p190
      %p192 = scmp.ne.s32.totalorder %s181, %s182
      %p193 = scmp.eq.s32.totalorder %s21, 0
      %p194 = por %p192, %p193
      %p195 = scmp.ne.s32.totalorder %s181, %s182
      %p196 = scmp.eq.s32.totalorder %s22, 1
      %p197 = por %p195, %p196
      %p199 = scmp.ne.s32.totalorder %s182, %s198
      %p200 = scmp.eq.s32.totalorder %s22, 0
      %p201 = por %p199, %p200
      %p202 = scmp.le.s32.totalorder 1, %s16
      %p203 = scmp.lt.s32.totalorder %s16, 3
      %p204 = pnand %p202, %p203
      %p205 = pneg %p204
      // Predicated region
      $region9: #{tpu_custom_call.1} parent=5 // pred_check
        _
      $region10: #{tpu_custom_call.1} parent=5 // pred_check_branch
        %207 = sbr.rel (%p204) target = $region12
      $region11: #{tpu_custom_call.1} parent=5 // pred_region
        %s208 = ssub.s32 %s16, 1
        // Predicated region
        $region13: #{tpu_custom_call.1} parent=11 // pred_check
          %p209 = pneg %p63
        $region14: #{tpu_custom_call.1} parent=11 // pred_check_branch
          %211 = sbr.rel (%p209) target = $region16
        $region15: #{tpu_custom_call.1} parent=11 // pred_region
          _
        $region16: #{tpu_custom_call.1} parent=11 // pred_fallthru
          _
        // Predicated region
        $region17: #{tpu_custom_call.1} parent=11 // pred_check
          %p212 = pneg %p84
        $region18: #{tpu_custom_call.1} parent=11 // pred_check_branch
          %214 = sbr.rel (%p212) target = $region20
        $region19: #{tpu_custom_call.1} parent=11 // pred_region
          _
        $region20: #{tpu_custom_call.1} parent=11 // pred_fallthru
          _
        // Predicated region
        $region21: #{tpu_custom_call.1} parent=11 // pred_check
          %p215 = pneg %p105
        $region22: #{tpu_custom_call.1} parent=11 // pred_check_branch
          %217 = sbr.rel (%p215) target = $region24
        $region23: #{tpu_custom_call.1} parent=11 // pred_region
          _
        $region24: #{tpu_custom_call.1} parent=11 // pred_fallthru
          _
        // Predicated region
        $region25: #{tpu_custom_call.1} parent=11 // pred_check
          %p218 = pneg %p126
        $region26: #{tpu_custom_call.1} parent=11 // pred_check_branch
          %220 = sbr.rel (%p218) target = $region28
        $region27: #{tpu_custom_call.1} parent=11 // pred_region
          _
        $region28: #{tpu_custom_call.1} parent=11 // pred_fallthru
          _
        // Predicated region
        $region29: #{tpu_custom_call.1} parent=11 // pred_check
          %p221 = pneg %p147
        $region30: #{tpu_custom_call.1} parent=11 // pred_check_branch
          %223 = sbr.rel (%p221) target = $region32
        $region31: #{tpu_custom_call.1} parent=11 // pred_region
          _
        $region32: #{tpu_custom_call.1} parent=11 // pred_fallthru
          _
        // Predicated region
        $region33: #{tpu_custom_call.1} parent=11 // pred_check
          %p224 = pneg %p168
        $region34: #{tpu_custom_call.1} parent=11 // pred_check_branch
          %226 = sbr.rel (%p224) target = $region36
        $region35: #{tpu_custom_call.1} parent=11 // pred_region
          _
        $region36: #{tpu_custom_call.1} parent=11 // pred_fallthru
          _
      $region12: #{tpu_custom_call.1} parent=5 // pred_fallthru
        _
      %p227 = scmp.lt.s32.totalorder %s16, 2
      // Predicated region
      $region37: #{tpu_custom_call.1} parent=5 // pred_check
        %p228 = pneg %p227
      $region38: #{tpu_custom_call.1} parent=5 // pred_check_branch
        %230 = sbr.rel (%p228) target = $region40
      $region39: #{tpu_custom_call.1} parent=5 // pred_region
        // Predicated region
        $region41: #{tpu_custom_call.1} parent=39 // pred_check
          %p231 = pneg %p36
        $region42: #{tpu_custom_call.1} parent=39 // pred_check_branch
          %233 = sbr.rel (%p231) target = $region44
        $region43: #{tpu_custom_call.1} parent=39 // pred_region
          %p234 = scmp.lt.s32.totalorder %s16, 1
          %s235 = scalar_select %p234, %s16, 1
          %s236 = smul.addr %s235, 2
          %s237 = smul.addr %s236, 4
          %s238 = scalar_lea.vmem %s0, %s237
        $region44: #{tpu_custom_call.1} parent=39 // pred_fallthru
          _
      $region40: #{tpu_custom_call.1} parent=5 // pred_fallthru
        _
      %p239 = scmp.le.s32.totalorder 1, %s16
      %p240 = scmp.lt.s32.totalorder %s16, 3
      %p241 = pnand %p239, %p240
      %p242 = pneg %p241
      // Predicated region
      $region45: #{tpu_custom_call.1} parent=5 // pred_check
        _
      $region46: #{tpu_custom_call.1} parent=5 // pred_check_branch
        %244 = sbr.rel (%p241) target = $region48
      $region47: #{tpu_custom_call.1} parent=5 // pred_region
        %s245 = ssub.s32 %s16, 1
        %p246 = scmp.lt.s32.totalorder %s21, 1
        %s247 = scalar_select %p246, %s21, 1
        %s248 = smul.addr %s247, 2
        %s249 = smul.addr %s248, 4
        %s250 = scalar_lea.vmem %s0, %s249
        %p251 = pneg %p42
        %p252 = pneg %p39
        %p253 = pneg %p63
        %p254 = pneg %p60
        %p255 = pneg %p84
        %p256 = pneg %p81
        %p257 = pneg %p105
        %p258 = pneg %p102
        %p259 = pneg %p126
        %p260 = pneg %p123
        %p261 = pneg %p147
        %p262 = pneg %p144
        %p263 = pneg %p168
        %p264 = pneg %p165
        %p265 = pneg %p194
        %p266 = pneg %p191
        %s267 = sand.u32 %s181, 1
        %s268 = scalar_lea.sflag [#allocation3], %s267
        %s269 = sand.u32 %s181, 1
        %s270 = scalar_lea.vmem [#allocation2], %s269
        %p271 = scmp.lt.s32.totalorder %s21, 1
        %s272 = scalar_select %p271, %s21, 1
        %s273 = smul.addr %s272, 2
        %s274 = smul.addr %s273, 4
        %s275 = scalar_lea.vmem %s0, %s274
        %v277 = vld [vmem:[%s275] sm:$0xf]
        %v278 = vld [vmem:[%s275 + $0x4] sm:$0xf]
        %v279 = vld [vmem:[%s5] sm:$0xff]
        %v280 = vld [vmem:[%s2] sm:$0xf]
        %v281 = vld [vmem:[%s2 + $0x4] sm:$0xf]
        %v282 = vld [vmem:[%s2 + $0x8] sm:$0xf]
        %v283 = vld [vmem:[%s2 + $0xc] sm:$0xf]
        %v284 = vld [vmem:[%s2 + $0x10] sm:$0xf]
        %v285 = vld [vmem:[%s2 + $0x14] sm:$0xf]
        %v286 = vld [vmem:[%s2 + $0x18] sm:$0xf]
        %v287 = vld [vmem:[%s2 + $0x1c] sm:$0xf]
        %v288 = vld [vmem:[%s2 + $0x20] sm:$0xf]
        %v289 = vld [vmem:[%s2 + $0x24] sm:$0xf]
        %v290 = vld [vmem:[%s2 + $0x28] sm:$0xf]
        %v291 = vld [vmem:[%s2 + $0x2c] sm:$0xf]
        %v292 = vld [vmem:[%s3] sm:$0xf]
        %v293 = vld [vmem:[%s3 + $0x4] sm:$0xf]
        %v294 = vld [vmem:[%s3 + $0x8] sm:$0xf]
        %v295 = vld [vmem:[%s3 + $0xc] sm:$0xf]
        %v296 = vld [vmem:[%s3 + $0x10] sm:$0xf]
        %v297 = vld [vmem:[%s3 + $0x14] sm:$0xf]
        %v298 = vld [vmem:[%s3 + $0x18] sm:$0xf]
        %v299 = vld [vmem:[%s3 + $0x1c] sm:$0xf]
        %v300 = vld [vmem:[%s3 + $0x20] sm:$0xf]
        %v301 = vld [vmem:[%s3 + $0x24] sm:$0xf]
        %v302 = vld [vmem:[%s3 + $0x28] sm:$0xf]
        %v303 = vld [vmem:[%s3 + $0x2c] sm:$0xf]
        %v304 = vld [vmem:[%s3 + $0x30] sm:$0xf]
        %v305 = vld [vmem:[%s3 + $0x34] sm:$0xf]
        %v306 = vld [vmem:[%s3 + $0x38] sm:$0xf]
        %v307 = vld [vmem:[%s3 + $0x3c] sm:$0xf]
        %v308 = vld [vmem:[%s3 + $0x40] sm:$0xf]
        %v309 = vld [vmem:[%s3 + $0x44] sm:$0xf]
        %v310 = vld [vmem:[%s3 + $0x48] sm:$0xf]
        %v311 = vld [vmem:[%s3 + $0x4c] sm:$0xf]
        %v312 = vlaneseq
        %v313 = vshrl.u32 %v312, 7
        %v314 = vsub.s32 0, %v313
        %v315 = vrot.slane %v279, %v314
        %v318 = vunpack.c.l.b16 %v277
        %v319 = vunpack.c.l.b16 %v278
        %v320 = vpack.c.b16 %v319, %v318
        %v325 = vunpack.c.l.b16 %v280
        %v326 = vunpack.c.l.b16 %v281
        %v327 = vunpack.c.l.b16 %v282
        %v328 = vunpack.c.l.b16 %v283
        %v329 = vpack.c.b16 %v326, %v325
        %v330 = vpack.c.b16 %v328, %v327
        %vm333 = vcmask 261120
        %v335 = vsel %vm333, %v320, 0
        %337 = vmatprep.subr.bf16.mxu0 0
        %338 = vmatpush1.bf16.msra.mxu0 %v329
        %339 = vmatprep.subr.bf16.mxu0 0
        %340 = vmatpush1.bf16.msra.mxu0 %v330
        %341 = vmatprep.subr.bf16.mxu0 0
        %342 = vmatpush1.bf16.msra.mxu0 0
        %343 = vmatprep.subr.bf16.mxu0 0
        %344 = vmatpush1.bf16.msra.mxu0 0
        %345 = vmatprep.subr.bf16.mxu0 0
        %346 = vmatpush1.bf16.msra.mxu0 0
        %347 = vmatprep.subr.bf16.mxu0 0
        %348 = vmatpush1.bf16.msra.mxu0 0
        %349 = vmatprep.subr.bf16.mxu0 0
        %350 = vmatpush1.bf16.msra.mxu0 0
        %351 = vmatprep.subr.bf16.mxu0 0
        %352 = vmatpush1.bf16.msra.mxu0 0
        %353 = vmatprep.subr.bf16.mxu0 0
        %354 = vmatpush1.bf16.msra.mxu0 0
        %355 = vmatprep.subr.bf16.mxu0 0
        %356 = vmatpush1.bf16.msra.mxu0 0
        %357 = vmatprep.subr.bf16.mxu0 0
        %358 = vmatpush1.bf16.msra.mxu0 0
        %359 = vmatprep.subr.bf16.mxu0 0
        %360 = vmatpush1.bf16.msra.mxu0 0
        %361 = vmatprep.subr.bf16.mxu0 0
        %362 = vmatpush1.bf16.msra.mxu0 0
        %363 = vmatprep.subr.bf16.mxu0 0
        %364 = vmatpush1.bf16.msra.mxu0 0
        %365 = vmatprep.subr.bf16.mxu0 0
        %366 = vmatpush1.bf16.msra.mxu0 0
        %367 = vmatprep.subr.bf16.mxu0 0
        %368 = vmatpush1.bf16.msra.mxu0 0
        %369 = vmatprep.mubr.bf16.mxu0 0
        %370 = vmatmul.mubr.bf16.gmra.mrb[0].mxu0 %v335
        %v371 = vpop.f32.mrb[0].mxu0
        %v372 = vadd.f32 %v315, %v371
        %v373 = vpop.f32.mrb[0].mxu0
        %v374 = vpop.f32.mrb[0].mxu0
        %v375 = vadd.f32 %v315, %v374
        %v376 = vpop.f32.mrb[0].mxu0
        %377 = vdwg.mxu0
        %v378 = vmax.f32 %v372, 0.0
        %v379 = vmax.f32 %v375, 0.0
        %v380 = vpack.c.bf16 %v379, %v378
        %v381 = vlaneseq
        %v382 = vshrl.u32 %v381, 7
        %v383 = vsub.s32 1, %v382
        %v384 = vrot.slane %v279, %v383
        %v389 = vunpack.c.l.b16 %v292
        %v390 = vunpack.c.l.b16 %v293
        %v391 = vunpack.c.l.b16 %v294
        %v392 = vunpack.c.l.b16 %v295
        %v393 = vpack.c.b16 %v390, %v389
        %v394 = vpack.c.b16 %v392, %v391
        %v398 = vsel %vm333, %v380, 0
        %400 = vmatprep.subr.bf16.mxu0 0
        %401 = vmatpush1.bf16.msra.mxu0 %v393
        %402 = vmatprep.subr.bf16.mxu0 0
        %403 = vmatpush1.bf16.msra.mxu0 %v394
        %404 = vmatprep.subr.bf16.mxu0 0
        %405 = vmatpush1.bf16.msra.mxu0 0
        %406 = vmatprep.subr.bf16.mxu0 0
        %407 = vmatpush1.bf16.msra.mxu0 0
        %408 = vmatprep.subr.bf16.mxu0 0
        %409 = vmatpush1.bf16.msra.mxu0 0
        %410 = vmatprep.subr.bf16.mxu0 0
        %411 = vmatpush1.bf16.msra.mxu0 0
        %412 = vmatprep.subr.bf16.mxu0 0
        %413 = vmatpush1.bf16.msra.mxu0 0
        %414 = vmatprep.subr.bf16.mxu0 0
        %415 = vmatpush1.bf16.msra.mxu0 0
        %416 = vmatprep.subr.bf16.mxu0 0
        %417 = vmatpush1.bf16.msra.mxu0 0
        %418 = vmatprep.subr.bf16.mxu0 0
        %419 = vmatpush1.bf16.msra.mxu0 0
        %420 = vmatprep.subr.bf16.mxu0 0
        %421 = vmatpush1.bf16.msra.mxu0 0
        %422 = vmatprep.subr.bf16.mxu0 0
        %423 = vmatpush1.bf16.msra.mxu0 0
        %424 = vmatprep.subr.bf16.mxu0 0
        %425 = vmatpush1.bf16.msra.mxu0 0
        %426 = vmatprep.subr.bf16.mxu0 0
        %427 = vmatpush1.bf16.msra.mxu0 0
        %428 = vmatprep.subr.bf16.mxu0 0
        %429 = vmatpush1.bf16.msra.mxu0 0
        %430 = vmatprep.subr.bf16.mxu0 0
        %431 = vmatpush1.bf16.msra.mxu0 0
        %432 = vmatprep.mubr.bf16.mxu0 0
        %433 = vmatmul.mubr.bf16.gmra.mrb[0].mxu0 %v398
        %v434 = vpop.f32.mrb[0].mxu0
        %v435 = vadd.f32 %v384, %v434
        %v436 = vpop.f32.mrb[0].mxu0
        %v437 = vpop.f32.mrb[0].mxu0
        %v438 = vadd.f32 %v384, %v437
        %v439 = vpop.f32.mrb[0].mxu0
        %440 = vdwg.mxu0
        %v441 = vmax.f32 %v435, 0.0
        %v442 = vmax.f32 %v438, 0.0
        %v443 = vpack.c.bf16 %v442, %v441
        %v444 = vld [vmem:[%s1] sm:$0xff]
        %v445 = vld [vmem:[%s1 + $0x8] sm:$0xff]
        %v447 = vsel %vm333, %v443, 0
        %449 = vmatprep.subr.bf16.mxu0 0
        %450 = vmatpush1.bf16.xpose.msra.mxu0 %v447
        %451 = vmatprep.subr.bf16.mxu0 0
        %452 = vmatpush1.bf16.xpose.msra.mxu0 0
        %453 = vmatprep.subr.bf16.mxu0 0
        %454 = vmatpush1.bf16.xpose.msra.mxu0 0
        %455 = vmatprep.subr.bf16.mxu0 0
        %456 = vmatpush1.bf16.xpose.msra.mxu0 0
        %457 = vmatprep.subr.bf16.mxu0 0
        %458 = vmatpush1.bf16.xpose.msra.mxu0 0
        %459 = vmatprep.subr.bf16.mxu0 0
        %460 = vmatpush1.bf16.xpose.msra.mxu0 0
        %461 = vmatprep.subr.bf16.mxu0 0
        %462 = vmatpush1.bf16.xpose.msra.mxu0 0
        %463 = vmatprep.subr.bf16.mxu0 0
        %464 = vmatpush1.bf16.xpose.msra.mxu0 0
        %465 = vmatprep.subr.bf16.mxu0 0
        %466 = vmatpush1.bf16.xpose.msra.mxu0 0
        %467 = vmatprep.subr.bf16.mxu0 0
        %468 = vmatpush1.bf16.xpose.msra.mxu0 0
        %469 = vmatprep.subr.bf16.mxu0 0
        %470 = vmatpush1.bf16.xpose.msra.mxu0 0
        %471 = vmatprep.subr.bf16.mxu0 0
        %472 = vmatpush1.bf16.xpose.msra.mxu0 0
        %473 = vmatprep.subr.bf16.mxu0 0
        %474 = vmatpush1.bf16.xpose.msra.mxu0 0
        %475 = vmatprep.subr.bf16.mxu0 0
        %476 = vmatpush1.bf16.xpose.msra.mxu0 0
        %477 = vmatprep.subr.bf16.mxu0 0
        %478 = vmatpush1.bf16.xpose.msra.mxu0 0
        %479 = vmatprep.subr.bf16.mxu0 0
        %480 = vmatpush1.bf16.xpose.msra.mxu0 0
        %481 = vmatprep.mubr.bf16.mxu0 0
        %482 = vmatmul.mubr.bf16.gmra.mrb[0].mxu0 %v447
        %v483 = vpop.f32.mrb[0].mxu0
        %v484 = vadd.f32 %v444, %v483
        %v485 = vpop.f32.mrb[0].mxu0
        %v486 = vpop.f32.mrb[0].mxu0
        %v487 = vadd.f32 %v445, %v486
        %v488 = vpop.f32.mrb[0].mxu0
        %489 = vdwg.mxu0
        %vm490 = vcmask 130048
        %v491 = vsel %vm490, %v484, -inf
        %492 = vmax.xlane.f32.xlu0 %v491
        %v493 = vpop.xlane.xlu0 %492
        %v494 = vsel %vm490, %v487, -inf
        %495 = vmax.xlane.f32.xlu0 %v494
        %v496 = vpop.xlane.xlu0 %495
        %v497 = vsub.f32 %v484, %v493
        %v498 = vsub.f32 %v487, %v496
        %v499 = vmul.f32 %v497, 1.442695
        %v500 = vpow.pop %v499
        %v501 = vmul.f32 %v498, 1.442695
        %v502 = vpow.pop %v501
        %v503 = vsel %vm490, %v500, 0.0
        %504 = vadd.xlane.f32.xlu0 %v503
        %v505 = vpop.xlane.xlu0 %504
        %v506 = vsel %vm490, %v502, 0.0
        %507 = vadd.xlane.f32.xlu0 %v506
        %v508 = vpop.xlane.xlu0 %507
        %v509 = vrcp.pop %v505
        %v510 = vrcp.pop %v508
        %v511 = vmul.f32 %v500, %v509
        %v512 = vmul.f32 %v502, %v510
        %v513 = vpack.c.bf16 %v512, %v511
        %v516 = vsel %vm490, %v513, 0
        %518 = vmatprep.subr.bf16.mxu0 0
        %519 = vmatpush1.bf16.msra.mxu0 %v320
        %520 = vmatprep.subr.bf16.mxu0 0
        %521 = vmatpush1.bf16.msra.mxu0 0
        %522 = vmatprep.subr.bf16.mxu0 0
        %523 = vmatpush1.bf16.msra.mxu0 0
        %524 = vmatprep.subr.bf16.mxu0 0
        %525 = vmatpush1.bf16.msra.mxu0 0
        %526 = vmatprep.subr.bf16.mxu0 0
        %527 = vmatpush1.bf16.msra.mxu0 0
        %528 = vmatprep.subr.bf16.mxu0 0
        %529 = vmatpush1.bf16.msra.mxu0 0
        %530 = vmatprep.subr.bf16.mxu0 0
        %531 = vmatpush1.bf16.msra.mxu0 0
        %532 = vmatprep.subr.bf16.mxu0 0
        %533 = vmatpush1.bf16.msra.mxu0 0
        %534 = vmatprep.subr.bf16.mxu0 0
        %535 = vmatpush1.bf16.msra.mxu0 0
        %536 = vmatprep.subr.bf16.mxu0 0
        %537 = vmatpush1.bf16.msra.mxu0 0
        %538 = vmatprep.subr.bf16.mxu0 0
        %539 = vmatpush1.bf16.msra.mxu0 0
        %540 = vmatprep.subr.bf16.mxu0 0
        %541 = vmatpush1.bf16.msra.mxu0 0
        %542 = vmatprep.subr.bf16.mxu0 0
        %543 = vmatpush1.bf16.msra.mxu0 0
        %544 = vmatprep.subr.bf16.mxu0 0
        %545 = vmatpush1.bf16.msra.mxu0 0
        %546 = vmatprep.subr.bf16.mxu0 0
        %547 = vmatpush1.bf16.msra.mxu0 0
        %548 = vmatprep.subr.bf16.mxu0 0
        %549 = vmatpush1.bf16.msra.mxu0 0
        %550 = vmatprep.mubr.bf16.mxu0 0
        %551 = vmatmul.mubr.bf16.gmra.mrb[0].mxu0 %v516
        %v552 = vpop.f32.mrb[0].mxu0
        %v553 = vadd.f32 0.0, %v552
        %v554 = vpop.f32.mrb[0].mxu0
        %v555 = vpop.f32.mrb[0].mxu0
        %v556 = vadd.f32 0.0, %v555
        %v557 = vpop.f32.mrb[0].mxu0
        %558 = vdwg.mxu0
        %v559 = vpack.c.bf16 %v556, %v553
        %v564 = vunpack.c.l.b16 %v288
        %v565 = vunpack.c.l.b16 %v289
        %v566 = vunpack.c.l.b16 %v290
        %v567 = vunpack.c.l.b16 %v291
        %v568 = vpack.c.b16 %v565, %v564
        %v569 = vpack.c.b16 %v567, %v566
        %v573 = vsel %vm333, %v559, 0
        %575 = vmatprep.subr.bf16.mxu0 0
        %576 = vmatpush1.bf16.msra.mxu0 %v568
        %577 = vmatprep.subr.bf16.mxu0 0
        %578 = vmatpush1.bf16.msra.mxu0 %v569
        %579 = vmatprep.subr.bf16.mxu0 0
        %580 = vmatpush1.bf16.msra.mxu0 0
        %581 = vmatprep.subr.bf16.mxu0 0
        %582 = vmatpush1.bf16.msra.mxu0 0
        %583 = vmatprep.subr.bf16.mxu0 0
        %584 = vmatpush1.bf16.msra.mxu0 0
        %585 = vmatprep.subr.bf16.mxu0 0
        %586 = vmatpush1.bf16.msra.mxu0 0
        %587 = vmatprep.subr.bf16.mxu0 0
        %588 = vmatpush1.bf16.msra.mxu0 0
        %589 = vmatprep.subr.bf16.mxu0 0
        %590 = vmatpush1.bf16.msra.mxu0 0
        %591 = vmatprep.subr.bf16.mxu0 0
        %592 = vmatpush1.bf16.msra.mxu0 0
        %593 = vmatprep.subr.bf16.mxu0 0
        %594 = vmatpush1.bf16.msra.mxu0 0
        %595 = vmatprep.subr.bf16.mxu0 0
        %596 = vmatpush1.bf16.msra.mxu0 0
        %597 = vmatprep.subr.bf16.mxu0 0
        %598 = vmatpush1.bf16.msra.mxu0 0
        %599 = vmatprep.subr.bf16.mxu0 0
        %600 = vmatpush1.bf16.msra.mxu0 0
        %601 = vmatprep.subr.bf16.mxu0 0
        %602 = vmatpush1.bf16.msra.mxu0 0
        %603 = vmatprep.subr.bf16.mxu0 0
        %604 = vmatpush1.bf16.msra.mxu0 0
        %605 = vmatprep.subr.bf16.mxu0 0
        %606 = vmatpush1.bf16.msra.mxu0 0
        %607 = vmatprep.mubr.bf16.mxu0 0
        %608 = vmatmul.mubr.bf16.gmra.mrb[0].mxu0 %v573
        %v609 = vpop.f32.mrb[0].mxu0
        %v610 = vadd.f32 0.0, %v609
        %v611 = vpop.f32.mrb[0].mxu0
        %v612 = vpop.f32.mrb[0].mxu0
        %v613 = vadd.f32 0.0, %v612
        %v614 = vpop.f32.mrb[0].mxu0
        %615 = vdwg.mxu0
        %v620 = vunpack.c.l.b16 %v284
        %v621 = vunpack.c.l.b16 %v285
        %v622 = vunpack.c.l.b16 %v286
        %v623 = vunpack.c.l.b16 %v287
        %v624 = vpack.c.b16 %v621, %v620
        %v625 = vpack.c.b16 %v623, %v622
        %628 = vmatprep.subr.bf16.mxu0 0
        %629 = vmatpush1.bf16.msra.mxu0 %v624
        %630 = vmatprep.subr.bf16.mxu0 0
        %631 = vmatpush1.bf16.msra.mxu0 %v625
        %632 = vmatprep.subr.bf16.mxu0 0
        %633 = vmatpush1.bf16.msra.mxu0 0
        %634 = vmatprep.subr.bf16.mxu0 0
        %635 = vmatpush1.bf16.msra.mxu0 0
        %636 = vmatprep.subr.bf16.mxu0 0
        %637 = vmatpush1.bf16.msra.mxu0 0
        %638 = vmatprep.subr.bf16.mxu0 0
        %639 = vmatpush1.bf16.msra.mxu0 0
        %640 = vmatprep.subr.bf16.mxu0 0
        %641 = vmatpush1.bf16.msra.mxu0 0
        %642 = vmatprep.subr.bf16.mxu0 0
        %643 = vmatpush1.bf16.msra.mxu0 0
        %644 = vmatprep.subr.bf16.mxu0 0
        %645 = vmatpush1.bf16.msra.mxu0 0
        %646 = vmatprep.subr.bf16.mxu0 0
        %647 = vmatpush1.bf16.msra.mxu0 0
        %648 = vmatprep.subr.bf16.mxu0 0
        %649 = vmatpush1.bf16.msra.mxu0 0
        %650 = vmatprep.subr.bf16.mxu0 0
        %651 = vmatpush1.bf16.msra.mxu0 0
        %652 = vmatprep.subr.bf16.mxu0 0
        %653 = vmatpush1.bf16.msra.mxu0 0
        %654 = vmatprep.subr.bf16.mxu0 0
        %655 = vmatpush1.bf16.msra.mxu0 0
        %656 = vmatprep.subr.bf16.mxu0 0
        %657 = vmatpush1.bf16.msra.mxu0 0
        %658 = vmatprep.subr.bf16.mxu0 0
        %659 = vmatpush1.bf16.msra.mxu0 0
        %660 = vmatprep.mubr.bf16.mxu0 0
        %661 = vmatmul.mubr.bf16.gmra.mrb[0].mxu0 %v335
        %v662 = vpop.f32.mrb[0].mxu0
        %v663 = vadd.f32 %v610, %v662
        %v664 = vpop.f32.mrb[0].mxu0
        %v665 = vpop.f32.mrb[0].mxu0
        %v666 = vadd.f32 %v613, %v665
        %v667 = vpop.f32.mrb[0].mxu0
        %668 = vdwg.mxu0
        %v669 = vlaneseq
        %v670 = vshrl.u32 %v669, 7
        %v671 = vsub.s32 2, %v670
        %v672 = vrot.slane %v279, %v671
        %v673 = vadd.f32 %v663, %v672
        %v674 = vadd.f32 %v666, %v672
        %v675 = vmax.f32 %v673, 0.0
        %v676 = vmax.f32 %v674, 0.0
        %v677 = vpack.c.bf16 %v676, %v675
        %v678 = vlaneseq
        %v679 = vshrl.u32 %v678, 7
        %v680 = vsub.s32 3, %v679
        %v681 = vrot.slane %v279, %v680
        %v686 = vunpack.c.l.b16 %v296
        %v687 = vunpack.c.l.b16 %v297
        %v688 = vunpack.c.l.b16 %v298
        %v689 = vunpack.c.l.b16 %v299
        %v690 = vpack.c.b16 %v687, %v686
        %v691 = vpack.c.b16 %v689, %v688
        %v695 = vsel %vm333, %v677, 0
        %697 = vmatprep.subr.bf16.mxu0 0
        %698 = vmatpush1.bf16.msra.mxu0 %v690
        %699 = vmatprep.subr.bf16.mxu0 0
        %700 = vmatpush1.bf16.msra.mxu0 %v691
        %701 = vmatprep.subr.bf16.mxu0 0
        %702 = vmatpush1.bf16.msra.mxu0 0
        %703 = vmatprep.subr.bf16.mxu0 0
        %704 = vmatpush1.bf16.msra.mxu0 0
        %705 = vmatprep.subr.bf16.mxu0 0
        %706 = vmatpush1.bf16.msra.mxu0 0
        %707 = vmatprep.subr.bf16.mxu0 0
        %708 = vmatpush1.bf16.msra.mxu0 0
        %709 = vmatprep.subr.bf16.mxu0 0
        %710 = vmatpush1.bf16.msra.mxu0 0
        %711 = vmatprep.subr.bf16.mxu0 0
        %712 = vmatpush1.bf16.msra.mxu0 0
        %713 = vmatprep.subr.bf16.mxu0 0
        %714 = vmatpush1.bf16.msra.mxu0 0
        %715 = vmatprep.subr.bf16.mxu0 0
        %716 = vmatpush1.bf16.msra.mxu0 0
        %717 = vmatprep.subr.bf16.mxu0 0
        %718 = vmatpush1.bf16.msra.mxu0 0
        %719 = vmatprep.subr.bf16.mxu0 0
        %720 = vmatpush1.bf16.msra.mxu0 0
        %721 = vmatprep.subr.bf16.mxu0 0
        %722 = vmatpush1.bf16.msra.mxu0 0
        %723 = vmatprep.subr.bf16.mxu0 0
        %724 = vmatpush1.bf16.msra.mxu0 0
        %725 = vmatprep.subr.bf16.mxu0 0
        %726 = vmatpush1.bf16.msra.mxu0 0
        %727 = vmatprep.subr.bf16.mxu0 0
        %728 = vmatpush1.bf16.msra.mxu0 0
        %729 = vmatprep.mubr.bf16.mxu0 0
        %730 = vmatmul.mubr.bf16.gmra.mrb[0].mxu0 %v695
        %v731 = vpop.f32.mrb[0].mxu0
        %v732 = vadd.f32 %v681, %v731
        %v733 = vpop.f32.mrb[0].mxu0
        %v734 = vpop.f32.mrb[0].mxu0
        %v735 = vadd.f32 %v681, %v734
        %v736 = vpop.f32.mrb[0].mxu0
        %737 = vdwg.mxu0
        %v738 = vmax.f32 %v732, 0.0
        %v739 = vmax.f32 %v735, 0.0
        %v740 = vsel %vm333, %v738, 0.0
        %v741 = vrot.slane %v740, 4
        %v742 = vadd.f32 %v740, %v741
        %v743 = vrot.slane %v742, 2
        %v744 = vadd.f32 %v742, %v743
        %v745 = vrot.slane %v744, 1
        %v746 = vadd.f32 %v744, %v745
        %v747 = vsel %vm333, %v739, 0.0
        %v748 = vrot.slane %v747, 4
        %v749 = vadd.f32 %v747, %v748
        %v750 = vrot.slane %v749, 2
        %v751 = vadd.f32 %v749, %v750
        %v752 = vrot.slane %v751, 1
        %v753 = vadd.f32 %v751, %v752
        %v754 = vpack.c.bf16 %v746, %v746
        %v755 = vpack.c.bf16 %v753, %v753
        %v760 = vunpack.c.l.b16 %v304
        %v761 = vunpack.c.l.b16 %v305
        %v762 = vunpack.c.l.b16 %v306
        %v763 = vunpack.c.l.b16 %v307
        %v764 = vpack.c.b16 %v761, %v760
        %v765 = vpack.c.b16 %v763, %v762
        %v769 = vsel %vm333, %v755, 0
        %771 = vmatprep.subr.bf16.mxu0 0
        %772 = vmatpush1.bf16.msra.mxu0 %v764
        %773 = vmatprep.subr.bf16.mxu0 0
        %774 = vmatpush1.bf16.msra.mxu0 %v765
        %775 = vmatprep.subr.bf16.mxu0 0
        %776 = vmatpush1.bf16.msra.mxu0 0
        %777 = vmatprep.subr.bf16.mxu0 0
        %778 = vmatpush1.bf16.msra.mxu0 0
        %779 = vmatprep.subr.bf16.mxu0 0
        %780 = vmatpush1.bf16.msra.mxu0 0
        %781 = vmatprep.subr.bf16.mxu0 0
        %782 = vmatpush1.bf16.msra.mxu0 0
        %783 = vmatprep.subr.bf16.mxu0 0
        %784 = vmatpush1.bf16.msra.mxu0 0
        %785 = vmatprep.subr.bf16.mxu0 0
        %786 = vmatpush1.bf16.msra.mxu0 0
        %787 = vmatprep.subr.bf16.mxu0 0
        %788 = vmatpush1.bf16.msra.mxu0 0
        %789 = vmatprep.subr.bf16.mxu0 0
        %790 = vmatpush1.bf16.msra.mxu0 0
        %791 = vmatprep.subr.bf16.mxu0 0
        %792 = vmatpush1.bf16.msra.mxu0 0
        %793 = vmatprep.subr.bf16.mxu0 0
        %794 = vmatpush1.bf16.msra.mxu0 0
        %795 = vmatprep.subr.bf16.mxu0 0
        %796 = vmatpush1.bf16.msra.mxu0 0
        %797 = vmatprep.subr.bf16.mxu0 0
        %798 = vmatpush1.bf16.msra.mxu0 0
        %799 = vmatprep.subr.bf16.mxu0 0
        %800 = vmatpush1.bf16.msra.mxu0 0
        %801 = vmatprep.subr.bf16.mxu0 0
        %802 = vmatpush1.bf16.msra.mxu0 0
        %803 = vmatprep.mubr.bf16.mxu0 0
        %804 = vmatmul.mubr.bf16.gmra.mrb[0].mxu0 %v769
        %v805 = vpop.f32.mrb[0].mxu0
        %v806 = vadd.f32 0.0, %v805
        %v807 = vpop.f32.mrb[0].mxu0
        %v808 = vpop.f32.mrb[0].mxu0
        %v809 = vpop.f32.mrb[0].mxu0
        %810 = vdwg.mxu0
        %v815 = vunpack.c.l.b16 %v300
        %v816 = vunpack.c.l.b16 %v301
        %v817 = vunpack.c.l.b16 %v302
        %v818 = vunpack.c.l.b16 %v303
        %v819 = vpack.c.b16 %v816, %v815
        %v820 = vpack.c.b16 %v818, %v817
        %v824 = vsel %vm333, %v754, 0
        %826 = vmatprep.subr.bf16.mxu0 0
        %827 = vmatpush1.bf16.msra.mxu0 %v819
        %828 = vmatprep.subr.bf16.mxu0 0
        %829 = vmatpush1.bf16.msra.mxu0 %v820
        %830 = vmatprep.subr.bf16.mxu0 0
        %831 = vmatpush1.bf16.msra.mxu0 0
        %832 = vmatprep.subr.bf16.mxu0 0
        %833 = vmatpush1.bf16.msra.mxu0 0
        %834 = vmatprep.subr.bf16.mxu0 0
        %835 = vmatpush1.bf16.msra.mxu0 0
        %836 = vmatprep.subr.bf16.mxu0 0
        %837 = vmatpush1.bf16.msra.mxu0 0
        %838 = vmatprep.subr.bf16.mxu0 0
        %839 = vmatpush1.bf16.msra.mxu0 0
        %840 = vmatprep.subr.bf16.mxu0 0
        %841 = vmatpush1.bf16.msra.mxu0 0
        %842 = vmatprep.subr.bf16.mxu0 0
        %843 = vmatpush1.bf16.msra.mxu0 0
        %844 = vmatprep.subr.bf16.mxu0 0
        %845 = vmatpush1.bf16.msra.mxu0 0
        %846 = vmatprep.subr.bf16.mxu0 0
        %847 = vmatpush1.bf16.msra.mxu0 0
        %848 = vmatprep.subr.bf16.mxu0 0
        %849 = vmatpush1.bf16.msra.mxu0 0
        %850 = vmatprep.subr.bf16.mxu0 0
        %851 = vmatpush1.bf16.msra.mxu0 0
        %852 = vmatprep.subr.bf16.mxu0 0
        %853 = vmatpush1.bf16.msra.mxu0 0
        %854 = vmatprep.subr.bf16.mxu0 0
        %855 = vmatpush1.bf16.msra.mxu0 0
        %856 = vmatprep.subr.bf16.mxu0 0
        %857 = vmatpush1.bf16.msra.mxu0 0
        %858 = vmatprep.mubr.bf16.mxu0 0
        %859 = vmatmul.mubr.bf16.gmra.mrb[0].mxu0 %v824
        %v860 = vpop.f32.mrb[0].mxu0
        %v861 = vadd.f32 %v806, %v860
        %v862 = vpop.f32.mrb[0].mxu0
        %v863 = vpop.f32.mrb[0].mxu0
        %v864 = vpop.f32.mrb[0].mxu0
        %865 = vdwg.mxu0
        %v867 = vrot.slane %v279, 4
        %v869 = vadd.f32 %v861, %v867
        %v870 = vmax.f32 %v869, 0.0
        %v871 = vpack.c.bf16 %v870, %v870
        %v876 = vunpack.c.l.b16 %v308
        %v877 = vunpack.c.l.b16 %v309
        %v878 = vunpack.c.l.b16 %v310
        %v879 = vunpack.c.l.b16 %v311
        %v880 = vpack.c.b16 %v877, %v876
        %v881 = vpack.c.b16 %v879, %v878
        %v884 = vrot.slane %v279, 5
        %v887 = vsel %vm333, %v871, 0
        %889 = vmatprep.subr.bf16.mxu0 0
        %890 = vmatpush1.bf16.msra.mxu0 %v880
        %891 = vmatprep.subr.bf16.mxu0 0
        %892 = vmatpush1.bf16.msra.mxu0 %v881
        %893 = vmatprep.subr.bf16.mxu0 0
        %894 = vmatpush1.bf16.msra.mxu0 0
        %895 = vmatprep.subr.bf16.mxu0 0
        %896 = vmatpush1.bf16.msra.mxu0 0
        %897 = vmatprep.subr.bf16.mxu0 0
        %898 = vmatpush1.bf16.msra.mxu0 0
        %899 = vmatprep.subr.bf16.mxu0 0
        %900 = vmatpush1.bf16.msra.mxu0 0
        %901 = vmatprep.subr.bf16.mxu0 0
        %902 = vmatpush1.bf16.msra.mxu0 0
        %903 = vmatprep.subr.bf16.mxu0 0
        %904 = vmatpush1.bf16.msra.mxu0 0
        %905 = vmatprep.subr.bf16.mxu0 0
        %906 = vmatpush1.bf16.msra.mxu0 0
        %907 = vmatprep.subr.bf16.mxu0 0
        %908 = vmatpush1.bf16.msra.mxu0 0
        %909 = vmatprep.subr.bf16.mxu0 0
        %910 = vmatpush1.bf16.msra.mxu0 0
        %911 = vmatprep.subr.bf16.mxu0 0
        %912 = vmatpush1.bf16.msra.mxu0 0
        %913 = vmatprep.subr.bf16.mxu0 0
        %914 = vmatpush1.bf16.msra.mxu0 0
        %915 = vmatprep.subr.bf16.mxu0 0
        %916 = vmatpush1.bf16.msra.mxu0 0
        %917 = vmatprep.subr.bf16.mxu0 0
        %918 = vmatpush1.bf16.msra.mxu0 0
        %919 = vmatprep.subr.bf16.mxu0 0
        %920 = vmatpush1.bf16.msra.mxu0 0
        %921 = vmatprep.mubr.bf16.mxu0 0
        %922 = vmatmul.mubr.bf16.gmra.mrb[0].mxu0 %v887
        %v923 = vpop.f32.mrb[0].mxu0
        %v924 = vadd.f32 %v884, %v923
        %v925 = vpop.f32.mrb[0].mxu0
        %v926 = vpop.f32.mrb[0].mxu0
        %v927 = vpop.f32.mrb[0].mxu0
        %928 = vdwg.mxu0
        %v929 = vmax.f32 %v924, 0.0
        %v930 = vld [vmem:[%s4] sm:$0xf]
        %v931 = vld [vmem:[%s4 + $0x4] sm:$0xf]
        %v932 = vld [vmem:[%s4 + $0x8] sm:$0xf]
        %v933 = vld [vmem:[%s4 + $0xc] sm:$0xf]
        %v934 = vpack.c.bf16 %v929, %v929
        %v935 = vld [vmem:[%s6] sm:$0x1]
        %v940 = vunpack.c.l.b16 %v930
        %v941 = vunpack.c.l.b16 %v931
        %v942 = vunpack.c.l.b16 %v932
        %v943 = vunpack.c.l.b16 %v933
        %v944 = vpack.c.b16 %v941, %v940
        %v945 = vpack.c.b16 %v943, %v942
        %v949 = vsel %vm333, %v934, 0
        %951 = vmatprep.subr.bf16.mxu0 0
        %952 = vmatpush1.bf16.msra.mxu0 %v944
        %953 = vmatprep.subr.bf16.mxu0 0
        %954 = vmatpush1.bf16.msra.mxu0 %v945
        %955 = vmatprep.subr.bf16.mxu0 0
        %956 = vmatpush1.bf16.msra.mxu0 0
        %957 = vmatprep.subr.bf16.mxu0 0
        %958 = vmatpush1.bf16.msra.mxu0 0
        %959 = vmatprep.subr.bf16.mxu0 0
        %960 = vmatpush1.bf16.msra.mxu0 0
        %961 = vmatprep.subr.bf16.mxu0 0
        %962 = vmatpush1.bf16.msra.mxu0 0
        %963 = vmatprep.subr.bf16.mxu0 0
        %964 = vmatpush1.bf16.msra.mxu0 0
        %965 = vmatprep.subr.bf16.mxu0 0
        %966 = vmatpush1.bf16.msra.mxu0 0
        %967 = vmatprep.subr.bf16.mxu0 0
        %968 = vmatpush1.bf16.msra.mxu0 0
        %969 = vmatprep.subr.bf16.mxu0 0
        %970 = vmatpush1.bf16.msra.mxu0 0
        %971 = vmatprep.subr.bf16.mxu0 0
        %972 = vmatpush1.bf16.msra.mxu0 0
        %973 = vmatprep.subr.bf16.mxu0 0
        %974 = vmatpush1.bf16.msra.mxu0 0
        %975 = vmatprep.subr.bf16.mxu0 0
        %976 = vmatpush1.bf16.msra.mxu0 0
        %977 = vmatprep.subr.bf16.mxu0 0
        %978 = vmatpush1.bf16.msra.mxu0 0
        %979 = vmatprep.subr.bf16.mxu0 0
        %980 = vmatpush1.bf16.msra.mxu0 0
        %981 = vmatprep.subr.bf16.mxu0 0
        %982 = vmatpush1.bf16.msra.mxu0 0
        %983 = vmatprep.mubr.bf16.mxu0 0
        %984 = vmatmul.mubr.bf16.gmra.mrb[0].mxu0 %v949
        %v985 = vpop.f32.mrb[0].mxu0
        %v986 = vadd.f32 %v935, %v985
        %v987 = vpop.f32.mrb[0].mxu0
        %v988 = vpop.f32.mrb[0].mxu0
        %v989 = vpop.f32.mrb[0].mxu0
        %990 = vdwg.mxu0
        %991 = vst [vmem:[%s270] sm:$0x1] %v986
        %s992 = sand.u32 %s181, 1
        %s993 = scalar_lea.sflag [#allocation3], %s992
        %s994 = sand.u32 %s181, 1
        %s995 = scalar_lea.vmem [#allocation2], %s994
        // Predicated region
        $region49: #{tpu_custom_call.1} parent=47 // pred_check
          %p996 = pneg %p191
        $region50: #{tpu_custom_call.1} parent=47 // pred_check_branch
          %998 = sbr.rel (%p996) target = $region52
        $region51: #{tpu_custom_call.1} parent=47 // pred_region
          %s1000 = ssub.s32 16, 16
          %1001 = vsyncadd %s993, %s1000
          %s1002 = smul.addr %s21, 16
          %s1003 = scalar_lea.hbm %s7, %s1002
          %s1005 = sshll.u32 %s995, 4
          %s1006 = int_to_ptr.vmem [resolvable:$true] %s1005
          %1008 = dma.vmem_to_hbm [thread:$0]  %s1006, 16, %s1003, %s993
        $region52: #{tpu_custom_call.1} parent=47 // pred_fallthru
          _
      $region48: #{tpu_custom_call.1} parent=5 // pred_fallthru
        _
      %p1009 = scmp.le.s32.totalorder 2, %s16
      // Predicated region
      $region53: #{tpu_custom_call.1} parent=5 // pred_check
        %p1010 = pneg %p1009
      $region54: #{tpu_custom_call.1} parent=5 // pred_check_branch
        %1012 = sbr.rel (%p1010) target = $region56
      $region55: #{tpu_custom_call.1} parent=5 // pred_region
        %s1013 = ssub.s32 %s16, 2
        // Predicated region
        $region57: #{tpu_custom_call.1} parent=55 // pred_check
          %p1014 = pneg %p197
        $region58: #{tpu_custom_call.1} parent=55 // pred_check_branch
          %1016 = sbr.rel (%p1014) target = $region60
        $region59: #{tpu_custom_call.1} parent=55 // pred_region
          %s1017 = sand.u32 %s182, 1
          %s1018 = scalar_lea.sflag [#allocation3], %s1017
          %s1019 = sand.u32 %s182, 1
          %s1020 = scalar_lea.vmem [#allocation2], %s1019
          %1021 = dma.done %s1018, 16
        $region60: #{tpu_custom_call.1} parent=55 // pred_fallthru
          _
      $region56: #{tpu_custom_call.1} parent=5 // pred_fallthru
        _
    $region6: #{tpu_custom_call.1} parent=1 // loop_footer
      %s20 = sadd.s32 1, %s16
    $region7: #{tpu_custom_call.1} parent=1 // loop_footer_branch
      %15 = sbr.rel target = $region3
    $region8: #{tpu_custom_call.1} parent=1 // loop_exit
      _
    %1022 = vsyncpa [#allocation3], 1
    %s1023 = scalar_lea.sflag [#allocation3], 1
    %1024 = vsyncpa %s1023, 1

</llo_original>
